<compile_context>
chip_gen: v5e
topology: v5e:2x2
jax: 0.10.0
libtpu: 0.0.40
codegen_flags: <defaults>
</compile_context>

<pallas_src>
import functools
import math

import jax
import jax.numpy as jnp
from jax import lax
from jax.experimental import pallas as pl
from jax.experimental.pallas import tpu as pltpu


def _round_up(x, m):
    return (x + m - 1) // m * m


def _vmem_limit_bytes(request_bytes):
    cap = 64 << 20                                    # conservative fallback (v7x per-TC)
    try:
        info_fn = getattr(pltpu, "get_tpu_info", None)
        if info_fn is not None:
            cap = int(getattr(info_fn(), "vmem_capacity_bytes", cap) or cap)
    except Exception:
        pass
    hi = int(cap * 0.9)
    return int(max(min(int(request_bytes), hi), min(32 << 20, hi)))


# --------------------- kernel A: per-batch LayerNorm + fused projections ----------------

def _proj_kernel(g_ref, gamma_ref, beta_ref, w_ref,
                 vs_ref, q_ref, k_ref, v_ref, *, D, Dp, dim_qk, dim_v):
    f32, bf16 = jnp.float32, jnp.bfloat16
    x = g_ref[0]                                       # [TR, Dp] f32 (lanes >= D are zero)
    rows = x.shape[0]

    mu = jnp.sum(x, axis=-1, keepdims=True) * (1.0 / D)
    diff = x - mu
    if Dp != D:
        lane = lax.broadcasted_iota(jnp.int32, (rows, Dp), 1)
        diff = jnp.where(lane < D, diff, 0.0)
    var = jnp.sum(diff * diff, axis=-1, keepdims=True) * (1.0 / D)
    # gamma/beta are zero on padded lanes -> normalized padded lanes stay exactly 0.
    hn = (diff * lax.rsqrt(var + 1e-5) * gamma_ref[...] + beta_ref[...]).astype(bf16)

    # ONE lane-dense matmul: columns ordered [Vs | Q(pre-scaled) | K | V].
    proj = jnp.dot(hn, w_ref[...], preferred_element_type=f32)
    vs_ref[0] = proj[:, :Dp].astype(bf16)
    q_ref[0] = proj[:, Dp:Dp + dim_qk].astype(bf16)
    k_ref[0] = proj[:, Dp + dim_qk:Dp + 2 * dim_qk].astype(bf16)
    v_ref[0] = proj[:, Dp + 2 * dim_qk:].astype(bf16)


# --------------------- kernel B: gated attention + equivariant vector update ------------

def _attn_kernel(q_ref, k_ref, v_ref, vs_ref, wo_ref, ew_ref, ev_ref, vec_ref,
                 g_out_ref, vec_out_ref, *, n_heads, dqk_h, dv_h, N, Np, Dp):
    f32, bf16 = jnp.float32, jnp.bfloat16
    H = n_heads
    q = q_ref[0]                                       # [TQ, H*dqk_h] bf16 (scale folded in)
    k = k_ref[0]                                       # [Np, H*dqk_h] bf16
    v = v_ref[0]                                       # [Np, H*dv_h]  bf16
    ew = ew_ref[0].astype(f32)                         # [TQ, Np] gate, upcast once
    TQ = q.shape[0]

    if Np != N:                                        # mask padded key columns (static)
        col_mask = lax.broadcasted_iota(jnp.int32, (TQ, Np), 1) < N

    a_sum = jnp.zeros((TQ, Np), f32)
    o_heads = []
    for h in range(H):                                 # static unroll over heads
        q_h = q[:, h * dqk_h:(h + 1) * dqk_h]
        k_h = k[:, h * dqk_h:(h + 1) * dqk_h]
        s = jnp.einsum('qc,nc->qn', q_h, k_h, preferred_element_type=f32)
        if Np != N:
            s = jnp.where(col_mask, s, -1e30)
        s = s - jnp.max(s, axis=-1, keepdims=True)
        e = jnp.exp(s)
        p = e * pl.reciprocal(jnp.sum(e, axis=-1, keepdims=True), approx=True)
        a_h = p * ew                                   # multiplicative edge-weight gating
        a_sum = a_sum + a_h
        o_heads.append(jnp.dot(a_h.astype(bf16), v[:, h * dv_h:(h + 1) * dv_h],
                               preferred_element_type=f32))   # contraction Np (large)

    # Heads assembled on the lane axis -> ONE output-projection matmul (contraction dim_v).
    o = jnp.concatenate(o_heads, axis=-1).astype(bf16)         # [TQ, H*dv_h]
    g_out_ref[0] = jnp.dot(o, wo_ref[...], preferred_element_type=f32)   # [TQ, Dp]

    # Equivariant vector update: all 3 components fused into ONE matmul.
    a_bar = (a_sum * (1.0 / H)).astype(bf16)                   # head-averaged attention
    L = (a_bar[None, :, :] * ev_ref[0]).reshape(3 * TQ, Np)    # bf16, edge_vec stays bf16
    dv = jnp.dot(L, vs_ref[0], preferred_element_type=f32)     # [3*TQ, Dp]
    vec_out_ref[0] = vec_ref[0] + dv.reshape(3, TQ, Dp)

    # NOTE: the reference forward computes self.ffn(G) but discards the result, so the FFN
    # (LayerNorm -> Linear -> GELU -> Linear -> Dropout) is intentionally omitted.
    # TODO(synk): exact S_SelfAttn / higher-order (ord > 1) semantics unavailable upstream.
    # TODO(synk): v7x refinements — kv-column flash axis (online softmax over key tiles) and
    #             pl.Buffered(1) on the per-batch constant blocks (K / V / Vs / Wo).


def equi_trans_layer(G, edge_weight, edge_vec, vec, params, *, dim_qk, dim_v, n_heads):
    B, N, D = G.shape
    H = n_heads
    assert dim_qk % H == 0 and dim_v % H == 0
    dqk_h, dv_h = dim_qk // H, dim_v // H

    f32, bf16 = jnp.float32, jnp.bfloat16
    Dp = _round_up(D, 128)                       # lane-dense feature dim
    Np8 = _round_up(N, 8)
    TQ = Np8 if Np8 <= 128 else 128              # query tile; Np padded to a multiple of it
    Np = _round_up(Np8, TQ)
    n_qt = Np // TQ

    def pad_to(x, tgt_shape, dtype):
        pads = [(0, t - s) for s, t in zip(x.shape, tgt_shape)]
        return jnp.pad(x, pads).astype(dtype)

    Gp = pad_to(G, (B, Np, Dp), f32)
    gamma = pad_to(params["gamma"], (1, Dp), f32)
    beta = pad_to(params["beta"], (1, Dp), f32)
    ew_p = pad_to(edge_weight, (B, Np, Np), bf16)            # streamed in bf16
    ev_p = pad_to(edge_vec, (B, 3, Np, Np), bf16)            # streamed in bf16
    vec_p = pad_to(vec, (B, 3, Np, Dp), f32)

    # Fused projection weight, columns [Vs | Q (1/sqrt(dqk_h) folded in) | K | V].
    wq_s = params["wq"] * (1.0 / math.sqrt(dqk_h))
    w_all = jnp.concatenate(
        [jnp.pad(params["wvec"], ((0, 0), (0, Dp - D))), wq_s, params["wk"], params["wv"]],
        axis=1)
    w_all = jnp.pad(w_all, ((0, Dp - D), (0, 0))).astype(bf16)          # [Dp, Wtot]
    wo_p = jnp.pad(params["wo"], ((0, 0), (0, Dp - D))).astype(bf16)    # [dim_v, Dp]
    Wtot = Dp + 2 * dim_qk + dim_v

    # ---------------- kernel A: per-batch projections ----------------
    vmem_a = (2 * (TQ * Dp * 4 + 2 * Dp * 4 + Dp * Wtot * 2)
              + 2 * (2 * TQ * Wtot * 2)
              + 4 * TQ * Wtot * 4 + (4 << 20))
    vs_a, q_a, k_a, v_a = pl.pallas_call(
        functools.partial(_proj_kernel, D=D, Dp=Dp, dim_qk=dim_qk, dim_v=dim_v),
        out_shape=(jax.ShapeDtypeStruct((B, Np, Dp), bf16),
                   jax.ShapeDtypeStruct((B, Np, dim_qk), bf16),
                   jax.ShapeDtypeStruct((B, Np, dim_qk), bf16),
                   jax.ShapeDtypeStruct((B, Np, dim_v), bf16)),
        grid_spec=pltpu.PrefetchScalarGridSpec(
            num_scalar_prefetch=0,
            grid=(B, n_qt),
            in_specs=[
                pl.BlockSpec((1, TQ, Dp), lambda b, r: (b, r, 0)),
                pl.BlockSpec((1, Dp), lambda b, r: (0, 0)),
                pl.BlockSpec((1, Dp), lambda b, r: (0, 0)),
                pl.BlockSpec((Dp, Wtot), lambda b, r: (0, 0)),
            ],
            out_specs=[
                pl.BlockSpec((1, TQ, Dp), lambda b, r: (b, r, 0)),
                pl.BlockSpec((1, TQ, dim_qk), lambda b, r: (b, r, 0)),
                pl.BlockSpec((1, TQ, dim_qk), lambda b, r: (b, r, 0)),
                pl.BlockSpec((1, TQ, dim_v), lambda b, r: (b, r, 0)),
            ]),
        compiler_params=pltpu.CompilerParams(
            dimension_semantics=("parallel", "parallel"),
            vmem_limit_bytes=_vmem_limit_bytes(vmem_a)),
    )(Gp, gamma, beta, w_all)

    # ---------------- kernel B: attention + equivariant update ----------------
    vmem_b = (
        2 * (TQ * dim_qk * 2 + Np * dim_qk * 2 + Np * dim_v * 2 + Np * Dp * 2
             + dim_v * Dp * 2 + TQ * Np * 2 + 3 * TQ * Np * 2 + 3 * TQ * Dp * 4)
        + 2 * (TQ * Dp * 4 + 3 * TQ * Dp * 4)
        + (7 * TQ * Np * 4 + 3 * TQ * Np * 2 + 8 * TQ * Dp * 4 + H * TQ * dv_h * 4)
        + (8 << 20))
    g_out, vec_out = pl.pallas_call(
        functools.partial(_attn_kernel, n_heads=H, dqk_h=dqk_h, dv_h=dv_h,
                          N=N, Np=Np, Dp=Dp),
        out_shape=(jax.ShapeDtypeStruct((B, Np, Dp), f32),
                   jax.ShapeDtypeStruct((B, 3, Np, Dp), f32)),
        grid_spec=pltpu.PrefetchScalarGridSpec(
            num_scalar_prefetch=0,
            grid=(B, n_qt),
            in_specs=[
                pl.BlockSpec((1, TQ, dim_qk), lambda b, qi: (b, qi, 0)),    # Q rows
                pl.BlockSpec((1, Np, dim_qk), lambda b, qi: (b, 0, 0)),     # K  (per batch)
                pl.BlockSpec((1, Np, dim_v), lambda b, qi: (b, 0, 0)),      # V  (per batch)
                pl.BlockSpec((1, Np, Dp), lambda b, qi: (b, 0, 0)),         # Vs (per batch)
                pl.BlockSpec((dim_v, Dp), lambda b, qi: (0, 0)),            # Wo
                pl.BlockSpec((1, TQ, Np), lambda b, qi: (b, qi, 0)),        # edge_weight stripe
                pl.BlockSpec((1, 3, TQ, Np), lambda b, qi: (b, 0, qi, 0)),  # edge_vec stripe
                pl.BlockSpec((1, 3, TQ, Dp), lambda b, qi: (b, 0, qi, 0)),  # vec stripe
            ],
            out_specs=[
                pl.BlockSpec((1, TQ, Dp), lambda b, qi: (b, qi, 0)),
                pl.BlockSpec((1, 3, TQ, Dp), lambda b, qi: (b, 0, qi, 0)),
            ]),
        compiler_params=pltpu.CompilerParams(
            dimension_semantics=("parallel", "parallel"),
            vmem_limit_bytes=_vmem_limit_bytes(vmem_b)),
    )(q_a, k_a, v_a, vs_a, wo_p, ew_p, ev_p, vec_p)

    # edge_weight / edge_vec pass through unchanged, matching the reference forward.
    return g_out[:, :N, :D], edge_weight, edge_vec, vec_out[:, :, :N, :D]


def init_params(key, dim_in, dim_qk, dim_v):
    ks = jax.random.split(key, 5)
    scale = lambda fan_in: 1.0 / math.sqrt(fan_in)
    return {
        "gamma": jnp.ones((1, dim_in), jnp.float32),
        "beta": jnp.zeros((1, dim_in), jnp.float32),
        "wq": jax.random.normal(ks[0], (dim_in, dim_qk), jnp.float32) * scale(dim_in),
        "wk": jax.random.normal(ks[1], (dim_in, dim_qk), jnp.float32) * scale(dim_in),
        "wv": jax.random.normal(ks[2], (dim_in, dim_v), jnp.float32) * scale(dim_in),
        "wo": jax.random.normal(ks[3], (dim_v, dim_in), jnp.float32) * scale(dim_v),
        "wvec": jax.random.normal(ks[4], (dim_in, dim_in), jnp.float32) * scale(dim_in),
    }


def _reference(G, edge_weight, edge_vec, vec, params, *, dim_qk, dim_v, n_heads):
    B, N, D = G.shape
    H = n_heads
    dqk_h, dv_h = dim_qk // H, dim_v // H
    mu = G.mean(-1, keepdims=True)
    var = ((G - mu) ** 2).mean(-1, keepdims=True)
    hn = (G - mu) / jnp.sqrt(var + 1e-5) * params["gamma"] + params["beta"]
    q = hn @ params["wq"]
    k = hn @ params["wk"]
    v = hn @ params["wv"]
    vs = hn @ params["wvec"]
    qh = q.reshape(B, N, H, dqk_h)
    kh = k.reshape(B, N, H, dqk_h)
    vh = v.reshape(B, N, H, dv_h)
    s = jnp.einsum('bqhc,bkhc->bhqk', qh, kh) / math.sqrt(dqk_h)
    p = jax.nn.softmax(s, axis=-1)
    a = p * edge_weight[:, None]
    o = jnp.einsum('bhqk,bkhd->bqhd', a, vh).reshape(B, N, dim_v)
    g = o @ params["wo"]
    a_bar = a.mean(axis=1)
    dv = jnp.einsum('bij,bcij,bjd->bcid', a_bar, edge_vec, vs)
    return g, vec + dv


if __name__ == "__main__":
    B, N, D = 2, 8, 32       # batch, nodes (seq), hidden
    dim_qk, dim_v, n_heads = 32, 32, 4

    key = jax.random.PRNGKey(0)
    k_g, k_ew, k_ev, k_vec, k_p = jax.random.split(key, 5)

    G = jax.random.normal(k_g, (B, N, D), jnp.float32)
    edge_weight = jax.nn.sigmoid(jax.random.normal(k_ew, (B, N, N), jnp.float32))
    raw_ev = jax.random.normal(k_ev, (B, 3, N, N), jnp.float32)
    edge_vec = raw_ev / (jnp.linalg.norm(raw_ev, axis=1, keepdims=True) + 1e-6)
    vec = jax.random.normal(k_vec, (B, 3, N, D), jnp.float32)

    params = init_params(k_p, D, dim_qk, dim_v)

    out = equi_trans_layer(G, edge_weight, edge_vec, vec, params,
                           dim_qk=dim_qk, dim_v=dim_v, n_heads=n_heads)
    out = jax.block_until_ready(out)
    g_out, ew_out, ev_out, vec_out = out

    assert g_out.shape == (B, N, D)
    assert ew_out.shape == (B, N, N)
    assert ev_out.shape == (B, 3, N, N)
    assert vec_out.shape == (B, 3, N, D)
    assert bool(jnp.all(jnp.isfinite(g_out))) and bool(jnp.all(jnp.isfinite(vec_out)))

    g_ref, vec_ref = _reference(G, edge_weight, edge_vec, vec, params,
                                dim_qk=dim_qk, dim_v=dim_v, n_heads=n_heads)
    err_g = float(jnp.max(jnp.abs(g_out - g_ref)))
    err_v = float(jnp.max(jnp.abs(vec_out - vec_ref)))
    # bf16 MXU operands + approx reciprocal -> allow a loose tolerance.
    assert err_g < 8e-2 and err_v < 8e-2, (err_g, err_v)

    print("KERNEL_OK")
</pallas_src>

<mosaic_0001>
module attributes {stable_mosaic.version = 11 : i64} {
  func.func @_proj_kernel(%arg0: i32, %arg1: i32, %arg2: memref<1x8x128xf32, #tpu.memory_space<vmem>>, %arg3: memref<1x128xf32, #tpu.memory_space<vmem>>, %arg4: memref<1x128xf32, #tpu.memory_space<vmem>>, %arg5: memref<128x224xbf16, #tpu.memory_space<vmem>>, %arg6: memref<1x8x128xbf16, #tpu.memory_space<vmem>>, %arg7: memref<1x8x32xbf16, #tpu.memory_space<vmem>>, %arg8: memref<1x8x32xbf16, #tpu.memory_space<vmem>>, %arg9: memref<1x8x32xbf16, #tpu.memory_space<vmem>>) attributes {dimension_semantics = [#tpu.dimension_semantics<parallel>, #tpu.dimension_semantics<parallel>], iteration_bounds = array<i64: 2, 1>, scalar_prefetch = 0 : i64, scratch_operands = 0 : i64, tpu.core_type = #tpu.core_type<tc>, window_params = [{transform_indices = @transform_0, window_bounds = array<i64: 1, 8, 128>}, {pipeline_mode = #tpu.pipeline_mode<synchronous>, transform_indices = @transform_1, window_bounds = array<i64: 1, 128>}, {pipeline_mode = #tpu.pipeline_mode<synchronous>, transform_indices = @transform_2, window_bounds = array<i64: 1, 128>}, {pipeline_mode = #tpu.pipeline_mode<synchronous>, transform_indices = @transform_3, window_bounds = array<i64: 128, 224>}, {transform_indices = @transform_4, window_bounds = array<i64: 1, 8, 128>}, {transform_indices = @transform_5, window_bounds = array<i64: 1, 8, 32>}, {transform_indices = @transform_6, window_bounds = array<i64: 1, 8, 32>}, {transform_indices = @transform_7, window_bounds = array<i64: 1, 8, 32>}]} {
    %c0 = arith.constant 0 : index
    %c0_0 = arith.constant 0 : index
    %c0_1 = arith.constant 0 : index
    %0 = vector.load %arg2[%c0, %c0_0, %c0_1] : memref<1x8x128xf32, #tpu.memory_space<vmem>>, vector<1x8x128xf32>
    %1 = vector.shape_cast %0 : vector<1x8x128xf32> to vector<8x128xf32>
    %cst = arith.constant dense<0.000000e+00> : vector<8xf32>
    %2 = vector.multi_reduction <add>, %1, %cst [1] : vector<8x128xf32> to vector<8xf32>
    %3 = vector.shape_cast %2 : vector<8xf32> to vector<8x1xf32>
    %cst_2 = arith.constant 3.125000e-02 : f32
    %4 = vector.broadcast %cst_2 : f32 to vector<8x1xf32>
    %5 = arith.mulf %3, %4 : vector<8x1xf32>
    %6 = vector.broadcast %5 : vector<8x1xf32> to vector<8x128xf32>
    %7 = arith.subf %1, %6 : vector<8x128xf32>
    %8 = tpu.iota {dimensions = array<i32: 1>} : vector<8x128xi32>
    %c32_i32 = arith.constant 32 : i32
    %9 = vector.broadcast %c32_i32 : i32 to vector<8x128xi32>
    %10 = arith.cmpi slt, %8, %9 : vector<8x128xi32>
    %cst_3 = arith.constant 0.000000e+00 : f32
    %11 = vector.broadcast %cst_3 : f32 to vector<8x128xf32>
    %12 = arith.select %10, %7, %11 : vector<8x128xi1>, vector<8x128xf32>
    %13 = arith.mulf %12, %12 : vector<8x128xf32>
    %cst_4 = arith.constant dense<0.000000e+00> : vector<8xf32>
    %14 = vector.multi_reduction <add>, %13, %cst_4 [1] : vector<8x128xf32> to vector<8xf32>
    %15 = vector.shape_cast %14 : vector<8xf32> to vector<8x1xf32>
    %cst_5 = arith.constant 3.125000e-02 : f32
    %16 = vector.broadcast %cst_5 : f32 to vector<8x1xf32>
    %17 = arith.mulf %15, %16 : vector<8x1xf32>
    %cst_6 = arith.constant 9.99999974E-6 : f32
    %18 = vector.broadcast %cst_6 : f32 to vector<8x1xf32>
    %19 = arith.addf %17, %18 : vector<8x1xf32>
    %20 = math.rsqrt %19 : vector<8x1xf32>
    %21 = vector.broadcast %20 : vector<8x1xf32> to vector<8x128xf32>
    %22 = arith.mulf %12, %21 : vector<8x128xf32>
    %c0_7 = arith.constant 0 : index
    %c0_8 = arith.constant 0 : index
    %23 = vector.load %arg3[%c0_7, %c0_8] : memref<1x128xf32, #tpu.memory_space<vmem>>, vector<1x128xf32>
    %24 = vector.broadcast %23 : vector<1x128xf32> to vector<8x128xf32>
    %25 = arith.mulf %22, %24 : vector<8x128xf32>
    %c0_9 = arith.constant 0 : index
    %c0_10 = arith.constant 0 : index
    %26 = vector.load %arg4[%c0_9, %c0_10] : memref<1x128xf32, #tpu.memory_space<vmem>>, vector<1x128xf32>
    %27 = vector.broadcast %26 : vector<1x128xf32> to vector<8x128xf32>
    %28 = arith.addf %25, %27 : vector<8x128xf32>
    %29 = arith.truncf %28 : vector<8x128xf32> to vector<8x128xbf16>
    %c0_11 = arith.constant 0 : index
    %c0_12 = arith.constant 0 : index
    %30 = vector.load %arg5[%c0_11, %c0_12] : memref<128x224xbf16, #tpu.memory_space<vmem>>, vector<128x224xbf16>
    %cst_13 = arith.constant dense<0.000000e+00> : vector<8x224xf32>
    %31 = tpu.matmul %29, %30, %cst_13 {dimension_numbers = #tpu.dot_dimension_numbers<[1], [0], [0], [1], [0, 0, 1, 1], [], []>} : vector<8x128xbf16>, vector<128x224xbf16>, vector<8x224xf32> -> vector<8x224xf32>
    %32 = vector.extract_strided_slice %31 {offsets = [0, 0], sizes = [8, 128], strides = [1, 1]} : vector<8x224xf32> to vector<8x128xf32>
    %33 = arith.truncf %32 : vector<8x128xf32> to vector<8x128xbf16>
    %c0_14 = arith.constant 0 : index
    %c0_15 = arith.constant 0 : index
    %c0_16 = arith.constant 0 : index
    %34 = vector.load %arg6[%c0_14, %c0_15, %c0_16] : memref<1x8x128xbf16, #tpu.memory_space<vmem>>, vector<1x8x128xbf16>
    %35 = vector.shape_cast %34 : vector<1x8x128xbf16> to vector<8x128xbf16>
    %36 = vector.shape_cast %33 : vector<8x128xbf16> to vector<1x8x128xbf16>
    tpu.vector_store %arg6[%c0_14, %c0_15, %c0_16], %36 {strides = array<i32>} : memref<1x8x128xbf16, #tpu.memory_space<vmem>>, vector<1x8x128xbf16>,
    %37 = vector.extract_strided_slice %31 {offsets = [0, 128], sizes = [8, 32], strides = [1, 1]} : vector<8x224xf32> to vector<8x32xf32>
    %38 = arith.truncf %37 : vector<8x32xf32> to vector<8x32xbf16>
    %c0_17 = arith.constant 0 : index
    %c0_18 = arith.constant 0 : index
    %c0_19 = arith.constant 0 : index
    %39 = vector.load %arg7[%c0_17, %c0_18, %c0_19] : memref<1x8x32xbf16, #tpu.memory_space<vmem>>, vector<1x8x32xbf16>
    %40 = vector.shape_cast %39 : vector<1x8x32xbf16> to vector<8x32xbf16>
    %41 = vector.shape_cast %38 : vector<8x32xbf16> to vector<1x8x32xbf16>
    tpu.vector_store %arg7[%c0_17, %c0_18, %c0_19], %41 {strides = array<i32>} : memref<1x8x32xbf16, #tpu.memory_space<vmem>>, vector<1x8x32xbf16>,
    %42 = vector.extract_strided_slice %31 {offsets = [0, 160], sizes = [8, 32], strides = [1, 1]} : vector<8x224xf32> to vector<8x32xf32>
    %43 = arith.truncf %42 : vector<8x32xf32> to vector<8x32xbf16>
    %c0_20 = arith.constant 0 : index
    %c0_21 = arith.constant 0 : index
    %c0_22 = arith.constant 0 : index
    %44 = vector.load %arg8[%c0_20, %c0_21, %c0_22] : memref<1x8x32xbf16, #tpu.memory_space<vmem>>, vector<1x8x32xbf16>
    %45 = vector.shape_cast %44 : vector<1x8x32xbf16> to vector<8x32xbf16>
    %46 = vector.shape_cast %43 : vector<8x32xbf16> to vector<1x8x32xbf16>
    tpu.vector_store %arg8[%c0_20, %c0_21, %c0_22], %46 {strides = array<i32>} : memref<1x8x32xbf16, #tpu.memory_space<vmem>>, vector<1x8x32xbf16>,
    %47 = vector.extract_strided_slice %31 {offsets = [0, 192], sizes = [8, 32], strides = [1, 1]} : vector<8x224xf32> to vector<8x32xf32>
    %48 = arith.truncf %47 : vector<8x32xf32> to vector<8x32xbf16>
    %c0_23 = arith.constant 0 : index
    %c0_24 = arith.constant 0 : index
    %c0_25 = arith.constant 0 : index
    %49 = vector.load %arg9[%c0_23, %c0_24, %c0_25] : memref<1x8x32xbf16, #tpu.memory_space<vmem>>, vector<1x8x32xbf16>
    %50 = vector.shape_cast %49 : vector<1x8x32xbf16> to vector<8x32xbf16>
    %51 = vector.shape_cast %48 : vector<8x32xbf16> to vector<1x8x32xbf16>
    tpu.vector_store %arg9[%c0_23, %c0_24, %c0_25], %51 {strides = array<i32>} : memref<1x8x32xbf16, #tpu.memory_space<vmem>>, vector<1x8x32xbf16>,
    return
  }
  func.func @transform_0(%arg0: i32, %arg1: i32) -> (i32, i32, i32) {
    %c0_i32 = arith.constant 0 : i32
    %c0_i32_0 = arith.constant 0 : i32
    return %arg0, %arg1, %c0_i32 : i32, i32, i32
  }
  func.func @transform_1(%arg0: i32, %arg1: i32) -> (i32, i32) {
    %c0_i32 = arith.constant 0 : i32
    %c0_i32_0 = arith.constant 0 : i32
    %c0_i32_1 = arith.constant 0 : i32
    return %c0_i32, %c0_i32_0 : i32, i32
  }
  func.func @transform_2(%arg0: i32, %arg1: i32) -> (i32, i32) {
    %c0_i32 = arith.constant 0 : i32
    %c0_i32_0 = arith.constant 0 : i32
    %c0_i32_1 = arith.constant 0 : i32
    return %c0_i32, %c0_i32_0 : i32, i32
  }
  func.func @transform_3(%arg0: i32, %arg1: i32) -> (i32, i32) {
    %c0_i32 = arith.constant 0 : i32
    %c0_i32_0 = arith.constant 0 : i32
    %c0_i32_1 = arith.constant 0 : i32
    return %c0_i32, %c0_i32_0 : i32, i32
  }
  func.func @transform_4(%arg0: i32, %arg1: i32) -> (i32, i32, i32) {
    %c0_i32 = arith.constant 0 : i32
    %c0_i32_0 = arith.constant 0 : i32
    return %arg0, %arg1, %c0_i32 : i32, i32, i32
  }
  func.func @transform_5(%arg0: i32, %arg1: i32) -> (i32, i32, i32) {
    %c0_i32 = arith.constant 0 : i32
    %c0_i32_0 = arith.constant 0 : i32
    return %arg0, %arg1, %c0_i32 : i32, i32, i32
  }
  func.func @transform_6(%arg0: i32, %arg1: i32) -> (i32, i32, i32) {
    %c0_i32 = arith.constant 0 : i32
    %c0_i32_0 = arith.constant 0 : i32
    return %arg0, %arg1, %c0_i32 : i32, i32, i32
  }
  func.func @transform_7(%arg0: i32, %arg1: i32) -> (i32, i32, i32) {
    %c0_i32 = arith.constant 0 : i32
    %c0_i32_0 = arith.constant 0 : i32
    return %arg0, %arg1, %c0_i32 : i32, i32, i32
  }
}

</mosaic_0001>

<llo_original>
// kernel: tpu_custom_call.1
$region0: #{tpu_custom_call.1}
  #allocation0 [shape = 'u32[]', space=smem, size = 0x4, offset = 0x4, fixed_abs, tag = 'smem constant byte address 0x4 - core index']
  #allocation1 [shape = 'u32[72,128]{1,0:T(1,128)}', space=vmem, size = 0x9000, scoped, tag = 'internal scratch']
  %s0 = inlined_call_operand.vmem [shape: f32[2,8,128], index: 0, kind: input, shape index: {}]
  %s1 = inlined_call_operand.vmem [shape: f32[1,128], index: 1, kind: input, shape index: {}]
  %s2 = inlined_call_operand.vmem [shape: f32[1,128], index: 2, kind: input, shape index: {}]
  %s3 = inlined_call_operand.vmem [shape: bf16[128,224], index: 3, kind: input, shape index: {}]
  %s4 = inlined_call_operand.hbm [shape: bf16[2,8,128], index: 4, kind: output, shape index: {0}]
  %s5 = inlined_call_operand.hbm [shape: bf16[2,8,32], index: 5, kind: output, shape index: {1}]
  %s6 = inlined_call_operand.hbm [shape: bf16[2,8,32], index: 6, kind: output, shape index: {2}]
  %s7 = inlined_call_operand.hbm [shape: bf16[2,8,32], index: 7, kind: output, shape index: {3}]
  %8 = xla_tuple %s4, %s5, %s6, %s7
  %s9 = sld [smem:[#allocation0]]
  $region73: #{tpu_custom_call.1} parent=0
    _
  %s11 = ssub.s32 1, %s9
  %s12 = scalar_select 0, %s11, %s9
  $region1: #{tpu_custom_call.1} parent=0
    #allocation2 [shape = 'u8[4096]{0}', space=vmem, size = 0x1000, scoped, tag = 'output window, operand 0']
    #allocation3 [shape = 's32[2]{0}', space=sflag, size = 0x8, scoped, tag = 'scoped memory for tpu_custom_call.1']
    #allocation4 [shape = 'u8[4096]{0}', space=vmem, size = 0x1000, scoped, tag = 'output window, operand 1']
    #allocation5 [shape = 's32[2]{0}', space=sflag, size = 0x8, scoped, tag = 'scoped memory for tpu_custom_call.1']
    #allocation6 [shape = 'u8[4096]{0}', space=vmem, size = 0x1000, scoped, tag = 'output window, operand 2']
    #allocation7 [shape = 'u8[4096]{0}', space=vmem, size = 0x1000, scoped, tag = 'output window, operand 3']
    #allocation8 [shape = 's32[2]{0}', space=sflag, size = 0x8, scoped, tag = 'scoped memory for tpu_custom_call.1']
    %13 = vsyncpa [#allocation3], 0
    %s14 = scalar_lea.sflag [#allocation3], 1
    %15 = vsyncpa %s14, 0
    %16 = vsyncpa [#allocation5], 0
    %s17 = scalar_lea.sflag [#allocation5], 1
    %18 = vsyncpa %s17, 0
    %19 = vsyncpa [#allocation8], 0
    %s20 = scalar_lea.sflag [#allocation8], 1
    %21 = vsyncpa %s20, 0
    loop: start=0, step=1, limit=4
    $region2: #{tpu_custom_call.1} parent=1 // loop_pre_header
      _
    $region3: #{tpu_custom_call.1} parent=1 // loop_header
      %s23 = sphi 0, %s27
      %p24 = scmp.ge.s32.totalorder %s23, 4
      %s30 = sphi 0, %s42
      %s31 = sphi 0, %s38
      %s32 = sphi 0, %s30
      %s33 = sphi 0, %s31
      %s34 = sphi 0, %s32
      %s35 = sphi 0, %s33
      %s47 = sphi 0, %s49
      %s50 = sphi 0, %s47
      %s51 = sphi 0, %s50
      %s67 = sphi 0, %s51
      %s71 = sphi 0, %s71
      %s73 = sphi 0, %s71
      %s74 = sphi 0, %s73
      %s88 = sphi 0, %s74
      %s92 = sphi 0, %s92
      %s94 = sphi 0, %s92
      %s95 = sphi 0, %s94
      %s109 = sphi 0, %s95
      %s113 = sphi 0, %s113
      %s115 = sphi 0, %s113
      %s116 = sphi 0, %s115
      %s130 = sphi 0, %s116
      %s138 = sphi 0, %s140
      %s141 = sphi 0, %s138
      %s142 = sphi 0, %s141
      %s158 = sphi 0, %s142
      %s166 = sphi 0, %s168
      %s169 = sphi 0, %s166
      %s170 = sphi 0, %s169
      %s186 = sphi 0, %s170
      %s194 = sphi 0, %s196
      %s197 = sphi 0, %s194
      %s198 = sphi 0, %s197
      %s214 = sphi 0, %s198
      %s222 = sphi 0, %s224
      %s225 = sphi 0, %s222
      %s226 = sphi 0, %s225
      %s242 = sphi 0, %s226
    $region4: #{tpu_custom_call.1} parent=1 // loop_header_branch
      %26 = sbr.rel (%p24) target = $region8
    $region5: #{tpu_custom_call.1} parent=1 // loop_body
      %s28 = ssub.s32 %s23, 1
      %s29 = ssub.s32 %s23, 2
      %s36 = sadd.s32 1, %s31
      %p37 = scmp.ge.s32.totalorder %s36, 1
      %s38 = scalar_select %p37, 0, %s36
      %s39 = sadd.s32 1, %s30
      %s40 = scalar_select %p37, %s39, %s30
      %p41 = scmp.ge.s32.totalorder %s40, 2
      %s42 = scalar_select %p41, 0, %s40
      %s43 = ssub.s32 %s30, %s42
      %s44 = ssub.s32 %s31, %s38
      %s45 = sor.u32 %s43, %s44
      %p46 = scmp.eq.s32.totalorder %s45, 0
      %s48 = sadd.s32 %s47, 1
      %s49 = scalar_select %p46, %s47, %s48
      %p52 = pneg %p46
      %p53 = scmp.eq.s32.totalorder %s23, 1
      %p54 = por %p52, %p53
      %p55 = scmp.ne.s32.totalorder %s47, %s50
      %p56 = scmp.eq.s32.totalorder %s23, 0
      %p57 = por %p55, %p56
      %p58 = scmp.ne.s32.totalorder %s47, %s50
      %p59 = scmp.eq.s32.totalorder %s28, 1
      %p60 = por %p58, %p59
      %p61 = scmp.ne.s32.totalorder %s50, %s51
      %p62 = scmp.eq.s32.totalorder %s28, 0
      %p63 = por %p61, %p62
      %p64 = scmp.ne.s32.totalorder %s50, %s51
      %p65 = scmp.eq.s32.totalorder %s29, 1
      %p66 = por %p64, %p65
      %p68 = scmp.ne.s32.totalorder %s51, %s67
      %p69 = scmp.eq.s32.totalorder %s29, 0
      %p70 = por %p68, %p69
      %s72 = sadd.s32 %s71, 1
      %p75 = scmp.eq.s32.totalorder %s23, 1
      %p76 = scmp.ne.s32.totalorder %s71, %s73
      %p77 = scmp.eq.s32.totalorder %s23, 0
      %p78 = por %p76, %p77
      %p79 = scmp.ne.s32.totalorder %s71, %s73
      %p80 = scmp.eq.s32.totalorder %s28, 1
      %p81 = por %p79, %p80
      %p82 = scmp.ne.s32.totalorder %s73, %s74
      %p83 = scmp.eq.s32.totalorder %s28, 0
      %p84 = por %p82, %p83
      %p85 = scmp.ne.s32.totalorder %s73, %s74
      %p86 = scmp.eq.s32.totalorder %s29, 1
      %p87 = por %p85, %p86
      %p89 = scmp.ne.s32.totalorder %s74, %s88
      %p90 = scmp.eq.s32.totalorder %s29, 0
      %p91 = por %p89, %p90
      %s93 = sadd.s32 %s92, 1
      %p96 = scmp.eq.s32.totalorder %s23, 1
      %p97 = scmp.ne.s32.totalorder %s92, %s94
      %p98 = scmp.eq.s32.totalorder %s23, 0
      %p99 = por %p97, %p98
      %p100 = scmp.ne.s32.totalorder %s92, %s94
      %p101 = scmp.eq.s32.totalorder %s28, 1
      %p102 = por %p100, %p101
      %p103 = scmp.ne.s32.totalorder %s94, %s95
      %p104 = scmp.eq.s32.totalorder %s28, 0
      %p105 = por %p103, %p104
      %p106 = scmp.ne.s32.totalorder %s94, %s95
      %p107 = scmp.eq.s32.totalorder %s29, 1
      %p108 = por %p106, %p107
      %p110 = scmp.ne.s32.totalorder %s95, %s109
      %p111 = scmp.eq.s32.totalorder %s29, 0
      %p112 = por %p110, %p111
      %s114 = sadd.s32 %s113, 1
      %p117 = scmp.eq.s32.totalorder %s23, 1
      %p118 = scmp.ne.s32.totalorder %s113, %s115
      %p119 = scmp.eq.s32.totalorder %s23, 0
      %p120 = por %p118, %p119
      %p121 = scmp.ne.s32.totalorder %s113, %s115
      %p122 = scmp.eq.s32.totalorder %s28, 1
      %p123 = por %p121, %p122
      %p124 = scmp.ne.s32.totalorder %s115, %s116
      %p125 = scmp.eq.s32.totalorder %s28, 0
      %p126 = por %p124, %p125
      %p127 = scmp.ne.s32.totalorder %s115, %s116
      %p128 = scmp.eq.s32.totalorder %s29, 1
      %p129 = por %p127, %p128
      %p131 = scmp.ne.s32.totalorder %s116, %s130
      %p132 = scmp.eq.s32.totalorder %s29, 0
      %p133 = por %p131, %p132
      %s134 = ssub.s32 %s30, %s42
      %s135 = ssub.s32 %s31, %s38
      %s136 = sor.u32 %s134, %s135
      %p137 = scmp.eq.s32.totalorder %s136, 0
      %s139 = sadd.s32 %s138, 1
      %s140 = scalar_select %p137, %s138, %s139
      %p143 = pneg %p137
      %p144 = scmp.eq.s32.totalorder %s23, 1
      %p145 = por %p143, %p144
      %p146 = scmp.ne.s32.totalorder %s138, %s141
      %p147 = scmp.eq.s32.totalorder %s23, 0
      %p148 = por %p146, %p147
      %p149 = scmp.ne.s32.totalorder %s138, %s141
      %p150 = scmp.eq.s32.totalorder %s28, 1
      %p151 = por %p149, %p150
      %p152 = scmp.ne.s32.totalorder %s141, %s142
      %p153 = scmp.eq.s32.totalorder %s28, 0
      %p154 = por %p152, %p153
      %p155 = scmp.ne.s32.totalorder %s141, %s142
      %p156 = scmp.eq.s32.totalorder %s29, 1
      %p157 = por %p155, %p156
      %p159 = scmp.ne.s32.totalorder %s142, %s158
      %p160 = scmp.eq.s32.totalorder %s29, 0
      %p161 = por %p159, %p160
      %s162 = ssub.s32 %s30, %s42
      %s163 = ssub.s32 %s31, %s38
      %s164 = sor.u32 %s162, %s163
      %p165 = scmp.eq.s32.totalorder %s164, 0
      %s167 = sadd.s32 %s166, 1
      %s168 = scalar_select %p165, %s166, %s167
      %p171 = pneg %p165
      %p172 = scmp.eq.s32.totalorder %s23, 1
      %p173 = por %p171, %p172
      %p174 = scmp.ne.s32.totalorder %s166, %s169
      %p175 = scmp.eq.s32.totalorder %s23, 0
      %p176 = por %p174, %p175
      %p177 = scmp.ne.s32.totalorder %s166, %s169
      %p178 = scmp.eq.s32.totalorder %s28, 1
      %p179 = por %p177, %p178
      %p180 = scmp.ne.s32.totalorder %s169, %s170
      %p181 = scmp.eq.s32.totalorder %s28, 0
      %p182 = por %p180, %p181
      %p183 = scmp.ne.s32.totalorder %s169, %s170
      %p184 = scmp.eq.s32.totalorder %s29, 1
      %p185 = por %p183, %p184
      %p187 = scmp.ne.s32.totalorder %s170, %s186
      %p188 = scmp.eq.s32.totalorder %s29, 0
      %p189 = por %p187, %p188
      %s190 = ssub.s32 %s30, %s42
      %s191 = ssub.s32 %s31, %s38
      %s192 = sor.u32 %s190, %s191
      %p193 = scmp.eq.s32.totalorder %s192, 0
      %s195 = sadd.s32 %s194, 1
      %s196 = scalar_select %p193, %s194, %s195
      %p199 = pneg %p193
      %p200 = scmp.eq.s32.totalorder %s23, 1
      %p201 = por %p199, %p200
      %p202 = scmp.ne.s32.totalorder %s194, %s197
      %p203 = scmp.eq.s32.totalorder %s23, 0
      %p204 = por %p202, %p203
      %p205 = scmp.ne.s32.totalorder %s194, %s197
      %p206 = scmp.eq.s32.totalorder %s28, 1
      %p207 = por %p205, %p206
      %p208 = scmp.ne.s32.totalorder %s197, %s198
      %p209 = scmp.eq.s32.totalorder %s28, 0
      %p210 = por %p208, %p209
      %p211 = scmp.ne.s32.totalorder %s197, %s198
      %p212 = scmp.eq.s32.totalorder %s29, 1
      %p213 = por %p211, %p212
      %p215 = scmp.ne.s32.totalorder %s198, %s214
      %p216 = scmp.eq.s32.totalorder %s29, 0
      %p217 = por %p215, %p216
      %s218 = ssub.s32 %s30, %s42
      %s219 = ssub.s32 %s31, %s38
      %s220 = sor.u32 %s218, %s219
      %p221 = scmp.eq.s32.totalorder %s220, 0
      %s223 = sadd.s32 %s222, 1
      %s224 = scalar_select %p221, %s222, %s223
      %p227 = pneg %p221
      %p228 = scmp.eq.s32.totalorder %s23, 1
      %p229 = por %p227, %p228
      %p230 = scmp.ne.s32.totalorder %s222, %s225
      %p231 = scmp.eq.s32.totalorder %s23, 0
      %p232 = por %p230, %p231
      %p233 = scmp.ne.s32.totalorder %s222, %s225
      %p234 = scmp.eq.s32.totalorder %s28, 1
      %p235 = por %p233, %p234
      %p236 = scmp.ne.s32.totalorder %s225, %s226
      %p237 = scmp.eq.s32.totalorder %s28, 0
      %p238 = por %p236, %p237
      %p239 = scmp.ne.s32.totalorder %s225, %s226
      %p240 = scmp.eq.s32.totalorder %s29, 1
      %p241 = por %p239, %p240
      %p243 = scmp.ne.s32.totalorder %s226, %s242
      %p244 = scmp.eq.s32.totalorder %s29, 0
      %p245 = por %p243, %p244
      %p246 = scmp.le.s32.totalorder 1, %s23
      %p247 = scmp.lt.s32.totalorder %s23, 3
      %p248 = pnand %p246, %p247
      %p249 = pneg %p248
      // Predicated region
      $region9: #{tpu_custom_call.1} parent=5 // pred_check
        _
      $region10: #{tpu_custom_call.1} parent=5 // pred_check_branch
        %251 = sbr.rel (%p248) target = $region12
      $region11: #{tpu_custom_call.1} parent=5 // pred_region
        %s252 = ssub.s32 %s23, 1
        // Predicated region
        $region13: #{tpu_custom_call.1} parent=11 // pred_check
          %p253 = pneg %p84
        $region14: #{tpu_custom_call.1} parent=11 // pred_check_branch
          %255 = sbr.rel (%p253) target = $region16
        $region15: #{tpu_custom_call.1} parent=11 // pred_region
          _
        $region16: #{tpu_custom_call.1} parent=11 // pred_fallthru
          _
        // Predicated region
        $region17: #{tpu_custom_call.1} parent=11 // pred_check
          %p256 = pneg %p105
        $region18: #{tpu_custom_call.1} parent=11 // pred_check_branch
          %258 = sbr.rel (%p256) target = $region20
        $region19: #{tpu_custom_call.1} parent=11 // pred_region
          _
        $region20: #{tpu_custom_call.1} parent=11 // pred_fallthru
          _
        // Predicated region
        $region21: #{tpu_custom_call.1} parent=11 // pred_check
          %p259 = pneg %p126
        $region22: #{tpu_custom_call.1} parent=11 // pred_check_branch
          %261 = sbr.rel (%p259) target = $region24
        $region23: #{tpu_custom_call.1} parent=11 // pred_region
          _
        $region24: #{tpu_custom_call.1} parent=11 // pred_fallthru
          _
      $region12: #{tpu_custom_call.1} parent=5 // pred_fallthru
        _
      %p262 = scmp.lt.s32.totalorder %s23, 2
      // Predicated region
      $region25: #{tpu_custom_call.1} parent=5 // pred_check
        %p263 = pneg %p262
      $region26: #{tpu_custom_call.1} parent=5 // pred_check_branch
        %265 = sbr.rel (%p263) target = $region28
      $region27: #{tpu_custom_call.1} parent=5 // pred_region
        // Predicated region
        $region29: #{tpu_custom_call.1} parent=27 // pred_check
          %p266 = pneg %p57
        $region30: #{tpu_custom_call.1} parent=27 // pred_check_branch
          %268 = sbr.rel (%p266) target = $region32
        $region31: #{tpu_custom_call.1} parent=27 // pred_region
          %p269 = scmp.lt.s32.totalorder %s30, 1
          %s270 = scalar_select %p269, %s30, 1
          %p271 = scmp.lt.s32.totalorder %s31, 0
          %s272 = scalar_select %p271, %s31, 0
          %s273 = sadd.s32 %s272, %s270
          %s274 = smul.addr %s273, 8
          %s275 = scalar_lea.vmem %s0, %s274
        $region32: #{tpu_custom_call.1} parent=27 // pred_fallthru
          _
      $region28: #{tpu_custom_call.1} parent=5 // pred_fallthru
        _
      %p276 = scmp.le.s32.totalorder 1, %s23
      %p277 = scmp.lt.s32.totalorder %s23, 3
      %p278 = pnand %p276, %p277
      %p279 = pneg %p278
      // Predicated region
      $region33: #{tpu_custom_call.1} parent=5 // pred_check
        _
      $region34: #{tpu_custom_call.1} parent=5 // pred_check_branch
        %281 = sbr.rel (%p278) target = $region36
      $region35: #{tpu_custom_call.1} parent=5 // pred_region
        %s282 = ssub.s32 %s23, 1
        %p283 = scmp.lt.s32.totalorder %s32, 1
        %s284 = scalar_select %p283, %s32, 1
        %p285 = scmp.lt.s32.totalorder %s33, 0
        %s286 = scalar_select %p285, %s33, 0
        %s287 = sadd.s32 %s286, %s284
        %s288 = smul.addr %s287, 8
        %s289 = scalar_lea.vmem %s0, %s288
        %p290 = pneg %p63
        %p291 = pneg %p60
        %p292 = pneg %p84
        %p293 = pneg %p81
        %p294 = pneg %p105
        %p295 = pneg %p102
        %p296 = pneg %p126
        %p297 = pneg %p123
        %p298 = pneg %p154
        %p299 = pneg %p151
        %s300 = sand.u32 %s141, 1
        %s301 = scalar_lea.sflag [#allocation3], %s300
        %s302 = sand.u32 %s141, 1
        %s303 = smul.addr %s302, 4
        %s304 = scalar_lea.vmem [#allocation2], %s303
        %p305 = pneg %p182
        %p306 = pneg %p179
        %s307 = sand.u32 %s28, 1
        %s308 = scalar_lea.sflag [#allocation5], %s307
        %s309 = sand.u32 %s169, 1
        %s310 = smul.addr %s309, 4
        %s311 = scalar_lea.vmem [#allocation4], %s310
        %p312 = pneg %p210
        %p313 = pneg %p207
        %s314 = sand.u32 %s28, 1
        %s315 = scalar_lea.sflag [#allocation5], %s314
        %s316 = sand.u32 %s197, 1
        %s317 = smul.addr %s316, 4
        %s318 = scalar_lea.vmem [#allocation6], %s317
        %p319 = pneg %p238
        %p320 = pneg %p235
        %s321 = sand.u32 %s225, 1
        %s322 = scalar_lea.sflag [#allocation8], %s321
        %s323 = sand.u32 %s225, 1
        %s324 = smul.addr %s323, 4
        %s325 = scalar_lea.vmem [#allocation7], %s324
        %p326 = scmp.lt.s32.totalorder %s32, 1
        %s327 = scalar_select %p326, %s32, 1
        %p328 = scmp.lt.s32.totalorder %s33, 0
        %s329 = scalar_select %p328, %s33, 0
        %s330 = sadd.s32 %s329, %s327
        %s331 = smul.addr %s330, 8
        %s332 = scalar_lea.vmem %s0, %s331
        %v333 = vld [vmem:[%s332] sm:$0xff]
        %334 = vadd.xlane.f32.xlu0 %v333
        %v335 = vpop.xlane.xlu0 %334
        %v336 = vmul.f32 %v335, 0.03125
        %v337 = vsub.f32 %v333, %v336
        %v338 = vlaneseq
        %v339 = vand.u32 %v338, 127
        %vm340 = vcmp.lt.s32.totalorder %v339, 32
        %v341 = vsel %vm340, %v337, 0.0
        %v342 = vmul.f32 %v341, %v341
        %343 = vadd.xlane.f32.xlu0 %v342
        %v344 = vpop.xlane.xlu0 %343
        %v345 = vmul.f32 %v344, 0.03125
        %v346 = vadd.f32 %v345, 1e-05
        %v347 = vrsqrt.pop %v346
        %v348 = vmul.f32 %v347, %v346
        %v349 = vmul.f32 %v348, %v347
        %v350 = vmul.f32 0.5, %v349
        %v351 = vsub.f32 1.5, %v350
        %v352 = vmul.f32 %v347, %v351
        %vm353 = vweird.f32 %v346
        %vm354 = vweird.f32 %v347
        %vm355 = vmor %vm353, %vm354
        %v356 = vsel %vm355, %v347, %v352
        %v357 = vmul.f32 %v341, %v356
        %v358 = vld [vmem:[%s1] sm:$0x1]
        %v360 = vperm.slane %v358, 0
        %v362 = vmul.f32 %v357, %v360
        %v363 = vld [vmem:[%s2] sm:$0x1]
        %v365 = vperm.slane %v363, 0
        %v367 = vadd.f32 %v362, %v365
        %v368 = vpack.c.bf16 %v367, %v367
        %v369 = vld [vmem:[%s3] sm:$0xff]
        %v370 = vld [vmem:[%s3 + $0x8] sm:$0xff]
        %v371 = vld [vmem:[%s3 + $0x10] sm:$0xff]
        %v372 = vld [vmem:[%s3 + $0x18] sm:$0xff]
        %v373 = vld [vmem:[%s3 + $0x20] sm:$0xff]
        %v374 = vld [vmem:[%s3 + $0x28] sm:$0xff]
        %v375 = vld [vmem:[%s3 + $0x30] sm:$0xff]
        %v376 = vld [vmem:[%s3 + $0x38] sm:$0xff]
        %v377 = vld [vmem:[%s3 + $0x40] sm:$0xff]
        %v378 = vld [vmem:[%s3 + $0x48] sm:$0xff]
        %v379 = vld [vmem:[%s3 + $0x50] sm:$0xff]
        %v380 = vld [vmem:[%s3 + $0x58] sm:$0xff]
        %v381 = vld [vmem:[%s3 + $0x60] sm:$0xff]
        %v382 = vld [vmem:[%s3 + $0x68] sm:$0xff]
        %v383 = vld [vmem:[%s3 + $0x70] sm:$0xff]
        %v384 = vld [vmem:[%s3 + $0x78] sm:$0xff]
        %v401 = vunpack.c.l.b16 %v369
        %v402 = vunpack.c.h.b16 %v369
        %v403 = vunpack.c.l.b16 %v370
        %v404 = vunpack.c.h.b16 %v370
        %v405 = vunpack.c.l.b16 %v371
        %v406 = vunpack.c.h.b16 %v371
        %v407 = vunpack.c.l.b16 %v372
        %v408 = vunpack.c.h.b16 %v372
        %v409 = vunpack.c.l.b16 %v373
        %v410 = vunpack.c.h.b16 %v373
        %v411 = vunpack.c.l.b16 %v374
        %v412 = vunpack.c.h.b16 %v374
        %v413 = vunpack.c.l.b16 %v375
        %v414 = vunpack.c.h.b16 %v375
        %v415 = vunpack.c.l.b16 %v376
        %v416 = vunpack.c.h.b16 %v376
        %v417 = vunpack.c.l.b16 %v377
        %v418 = vunpack.c.h.b16 %v377
        %v419 = vunpack.c.l.b16 %v378
        %v420 = vunpack.c.h.b16 %v378
        %v421 = vunpack.c.l.b16 %v379
        %v422 = vunpack.c.h.b16 %v379
        %v423 = vunpack.c.l.b16 %v380
        %v424 = vunpack.c.h.b16 %v380
        %v425 = vunpack.c.l.b16 %v381
        %v426 = vunpack.c.h.b16 %v381
        %v427 = vunpack.c.l.b16 %v382
        %v428 = vunpack.c.h.b16 %v382
        %v429 = vunpack.c.l.b16 %v383
        %v430 = vunpack.c.h.b16 %v383
        %v431 = vunpack.c.l.b16 %v384
        %v432 = vunpack.c.h.b16 %v384
        %v433 = vpack.c.b16 %v403, %v401
        %v434 = vpack.c.b16 %v404, %v402
        %v435 = vpack.c.b16 %v407, %v405
        %v436 = vpack.c.b16 %v408, %v406
        %v437 = vpack.c.b16 %v411, %v409
        %v438 = vpack.c.b16 %v412, %v410
        %v439 = vpack.c.b16 %v415, %v413
        %v440 = vpack.c.b16 %v416, %v414
        %v441 = vpack.c.b16 %v419, %v417
        %v442 = vpack.c.b16 %v420, %v418
        %v443 = vpack.c.b16 %v423, %v421
        %v444 = vpack.c.b16 %v424, %v422
        %v445 = vpack.c.b16 %v427, %v425
        %v446 = vpack.c.b16 %v428, %v426
        %v447 = vpack.c.b16 %v431, %v429
        %v448 = vpack.c.b16 %v432, %v430
        %465 = vmatpush.bf16.msra.mxu0 %v447
        %466 = vmatpush.bf16.msra.mxu0 %v445
        %467 = vmatpush.bf16.msra.mxu0 %v443
        %468 = vmatpush.bf16.msra.mxu0 %v441
        %469 = vmatpush.bf16.msra.mxu0 %v439
        %470 = vmatpush.bf16.msra.mxu0 %v437
        %471 = vmatpush.bf16.msra.mxu0 %v435
        %472 = vmatpush.bf16.msra.mxu0 %v433
        %473 = vmatmul.bf16.gmra.mxu0 %v368
        %v474 = vpop.f32.mrf.mxu0
        %v475 = vadd.f32 0.0, %v474
        %v476 = vpop.f32.mrf.mxu0
        %477 = vdwg.mxu0
        %478 = vmatpush.bf16.msra.mxu0 %v448
        %479 = vmatpush.bf16.msra.mxu0 %v446
        %480 = vmatpush.bf16.msra.mxu0 %v444
        %481 = vmatpush.bf16.msra.mxu0 %v442
        %482 = vmatpush.bf16.msra.mxu0 %v440
        %483 = vmatpush.bf16.msra.mxu0 %v438
        %484 = vmatpush.bf16.msra.mxu0 %v436
        %485 = vmatpush.bf16.msra.mxu0 %v434
        %486 = vmatmul.bf16.gmra.mxu0 %v368
        %v487 = vpop.f32.mrf.mxu0
        %v488 = vadd.f32 0.0, %v487
        %v489 = vpop.f32.mrf.mxu0
        %490 = vdwg.mxu0
        %v491 = vpack.c.bf16 %v475, %v475
        %492 = vst [vmem:[%s304] sm:$0xf] %v491
        %v493 = vpack.c.bf16 %v488, %v488
        %vm494 = vcmask 257024
        %495 = vst.msk [vmem:[%s311] sm:$0xf] %vm494, %v493
        %497 = vrot.lane.b32.xlu0 %v493, 96
        %v498 = vpop.permute.xlu0 %497
        %500 = vst.msk [vmem:[%s318] sm:$0xf] %vm494, %v498
        %501 = vrot.lane.b32.xlu0 %v493, 64
        %v502 = vpop.permute.xlu0 %501
        %504 = vst.msk [vmem:[%s325] sm:$0xf] %vm494, %v502
        %s505 = sand.u32 %s141, 1
        %s506 = scalar_lea.sflag [#allocation3], %s505
        %s507 = sand.u32 %s141, 1
        %s508 = smul.addr %s507, 4
        %s509 = scalar_lea.vmem [#allocation2], %s508
        %s510 = sand.u32 %s28, 1
        %s511 = scalar_lea.sflag [#allocation5], %s510
        %s512 = sand.u32 %s169, 1
        %s513 = smul.addr %s512, 4
        %s514 = scalar_lea.vmem [#allocation4], %s513
        %s515 = sand.u32 %s28, 1
        %s516 = scalar_lea.sflag [#allocation5], %s515
        %s517 = sand.u32 %s197, 1
        %s518 = smul.addr %s517, 4
        %s519 = scalar_lea.vmem [#allocation6], %s518
        %s520 = sand.u32 %s225, 1
        %s521 = scalar_lea.sflag [#allocation8], %s520
        %s522 = sand.u32 %s225, 1
        %s523 = smul.addr %s522, 4
        %s524 = scalar_lea.vmem [#allocation7], %s523
        // Predicated region
        $region37: #{tpu_custom_call.1} parent=35 // pred_check
          %p525 = pneg %p151
        $region38: #{tpu_custom_call.1} parent=35 // pred_check_branch
          %527 = sbr.rel (%p525) target = $region40
        $region39: #{tpu_custom_call.1} parent=35 // pred_region
          %529 = vsyncadd %s506, 0
          %s530 = sadd.s32 %s33, %s32
          %s531 = smul.addr %s530, 4
          %s532 = scalar_lea.hbm %s4, %s531
          %s534 = sshll.u32 %s509, 4
          %s535 = int_to_ptr.vmem [resolvable:$true] %s534
          %s536 = sshll.u32 %s532, 4
          %s537 = int_to_ptr.hbm [resolvable:$true] %s536
          %539 = dma.vmem_to_hbm [thread:$0]  %s535, 64, %s537, %s506
        $region40: #{tpu_custom_call.1} parent=35 // pred_fallthru
          _
        // Predicated region
        $region41: #{tpu_custom_call.1} parent=35 // pred_check
          %p540 = pneg %p179
        $region42: #{tpu_custom_call.1} parent=35 // pred_check_branch
          %542 = sbr.rel (%p540) target = $region44
        $region43: #{tpu_custom_call.1} parent=35 // pred_region
          %544 = vsyncadd %s511, 0
          %s545 = sadd.s32 %s33, %s32
          %s546 = smul.addr %s545, 4
          %s547 = scalar_lea.hbm %s5, %s546
          %s549 = sshll.u32 %s514, 4
          %s550 = int_to_ptr.vmem [resolvable:$true] %s549
          %s551 = sshll.u32 %s547, 4
          %s552 = int_to_ptr.hbm [resolvable:$true] %s551
          %554 = dma.vmem_to_hbm [thread:$0]  %s550, 64, %s552, %s511
        $region44: #{tpu_custom_call.1} parent=35 // pred_fallthru
          _
        // Predicated region
        $region45: #{tpu_custom_call.1} parent=35 // pred_check
          %p555 = pneg %p207
        $region46: #{tpu_custom_call.1} parent=35 // pred_check_branch
          %557 = sbr.rel (%p555) target = $region48
        $region47: #{tpu_custom_call.1} parent=35 // pred_region
          %559 = vsyncadd %s516, 0
          %s560 = sadd.s32 %s33, %s32
          %s561 = smul.addr %s560, 4
          %s562 = scalar_lea.hbm %s6, %s561
          %s564 = sshll.u32 %s519, 4
          %s565 = int_to_ptr.vmem [resolvable:$true] %s564
          %s566 = sshll.u32 %s562, 4
          %s567 = int_to_ptr.hbm [resolvable:$true] %s566
          %569 = dma.vmem_to_hbm [thread:$0]  %s565, 64, %s567, %s516
        $region48: #{tpu_custom_call.1} parent=35 // pred_fallthru
          _
        // Predicated region
        $region49: #{tpu_custom_call.1} parent=35 // pred_check
          %p570 = pneg %p235
        $region50: #{tpu_custom_call.1} parent=35 // pred_check_branch
          %572 = sbr.rel (%p570) target = $region52
        $region51: #{tpu_custom_call.1} parent=35 // pred_region
          %574 = vsyncadd %s521, 0
          %s575 = sadd.s32 %s33, %s32
          %s576 = smul.addr %s575, 4
          %s577 = scalar_lea.hbm %s7, %s576
          %s579 = sshll.u32 %s524, 4
          %s580 = int_to_ptr.vmem [resolvable:$true] %s579
          %s581 = sshll.u32 %s577, 4
          %s582 = int_to_ptr.hbm [resolvable:$true] %s581
          %584 = dma.vmem_to_hbm [thread:$0]  %s580, 64, %s582, %s521
        $region52: #{tpu_custom_call.1} parent=35 // pred_fallthru
          _
      $region36: #{tpu_custom_call.1} parent=5 // pred_fallthru
        _
      %p585 = scmp.le.s32.totalorder 2, %s23
      // Predicated region
      $region53: #{tpu_custom_call.1} parent=5 // pred_check
        %p586 = pneg %p585
      $region54: #{tpu_custom_call.1} parent=5 // pred_check_branch
        %588 = sbr.rel (%p586) target = $region56
      $region55: #{tpu_custom_call.1} parent=5 // pred_region
        %s589 = ssub.s32 %s23, 2
        // Predicated region
        $region57: #{tpu_custom_call.1} parent=55 // pred_check
          %p590 = pneg %p157
        $region58: #{tpu_custom_call.1} parent=55 // pred_check_branch
          %592 = sbr.rel (%p590) target = $region60
        $region59: #{tpu_custom_call.1} parent=55 // pred_region
          %s593 = sand.u32 %s142, 1
          %s594 = scalar_lea.sflag [#allocation3], %s593
          %s595 = sand.u32 %s142, 1
          %s596 = smul.addr %s595, 4
          %s597 = scalar_lea.vmem [#allocation2], %s596
          %599 = dma.done %s594, 64
        $region60: #{tpu_custom_call.1} parent=55 // pred_fallthru
          _
        // Predicated region
        $region61: #{tpu_custom_call.1} parent=55 // pred_check
          %p600 = pneg %p185
        $region62: #{tpu_custom_call.1} parent=55 // pred_check_branch
          %602 = sbr.rel (%p600) target = $region64
        $region63: #{tpu_custom_call.1} parent=55 // pred_region
          %s603 = sand.u32 %s29, 1
          %s604 = scalar_lea.sflag [#allocation5], %s603
          %s605 = sand.u32 %s170, 1
          %s606 = smul.addr %s605, 4
          %s607 = scalar_lea.vmem [#allocation4], %s606
          %609 = dma.done %s604, 64
        $region64: #{tpu_custom_call.1} parent=55 // pred_fallthru
          _
        // Predicated region
        $region65: #{tpu_custom_call.1} parent=55 // pred_check
          %p610 = pneg %p213
        $region66: #{tpu_custom_call.1} parent=55 // pred_check_branch
          %612 = sbr.rel (%p610) target = $region68
        $region67: #{tpu_custom_call.1} parent=55 // pred_region
          %s613 = sand.u32 %s29, 1
          %s614 = scalar_lea.sflag [#allocation5], %s613
          %s615 = sand.u32 %s198, 1
          %s616 = smul.addr %s615, 4
          %s617 = scalar_lea.vmem [#allocation6], %s616
          %619 = dma.done %s614, 64
        $region68: #{tpu_custom_call.1} parent=55 // pred_fallthru
          _
        // Predicated region
        $region69: #{tpu_custom_call.1} parent=55 // pred_check
          %p620 = pneg %p241
        $region70: #{tpu_custom_call.1} parent=55 // pred_check_branch
          %622 = sbr.rel (%p620) target = $region72
        $region71: #{tpu_custom_call.1} parent=55 // pred_region
          %s623 = sand.u32 %s226, 1
          %s624 = scalar_lea.sflag [#allocation8], %s623
          %s625 = sand.u32 %s226, 1
          %s626 = smul.addr %s625, 4
          %s627 = scalar_lea.vmem [#allocation7], %s626
          %629 = dma.done %s624, 64
        $region72: #{tpu_custom_call.1} parent=55 // pred_fallthru
          _
      $region56: #{tpu_custom_call.1} parent=5 // pred_fallthru
        _
    $region6: #{tpu_custom_call.1} parent=1 // loop_footer
      %s27 = sadd.s32 1, %s23
    $region7: #{tpu_custom_call.1} parent=1 // loop_footer_branch
      %22 = sbr.rel target = $region3
    $region8: #{tpu_custom_call.1} parent=1 // loop_exit
      _
    %630 = vsyncpa [#allocation3], 1
    %s631 = scalar_lea.sflag [#allocation3], 1
    %632 = vsyncpa %s631, 1
    %633 = vsyncpa [#allocation5], 1
    %s634 = scalar_lea.sflag [#allocation5], 1
    %635 = vsyncpa %s634, 1
    %636 = vsyncpa [#allocation8], 1
    %s637 = scalar_lea.sflag [#allocation8], 1
    %638 = vsyncpa %s637, 1

</llo_original>
